<compile_context>
chip_gen: v6e
topology: v6e:2x2x1
jax: 0.10.0
libtpu: 0.0.40
codegen_flags: <defaults>
</compile_context>

<pallas_src>
import functools

import numpy as np

import jax
import jax.numpy as jnp
from jax.experimental import pallas as pl
from jax.experimental.pallas import tpu as pltpu

EPS = 1e-5
POOL_SIZES = (1, 2, 3, 6)
N_POS = sum(k * k for k in POOL_SIZES)        # 1 + 4 + 9 + 36 = 50


# ----------------------- host-side (cached) table builders -------------------
def _pool_mask_np(n_in, n_out):
    """0/1 bin-membership mask (n_out, n_in) + bin sizes, matching
    nn.AdaptiveAvgPool2d binning."""
    i = np.arange(n_out)
    starts = (i * n_in) // n_out
    ends = ((i + 1) * n_in + n_out - 1) // n_out            # ceil
    pos = np.arange(n_in)
    mask = (pos[None, :] >= starts[:, None]) & (pos[None, :] < ends[:, None])
    return mask.astype(np.float32), (ends - starts).astype(np.float32)


def _interp_matrix_np(n_in, n_out):
    """(n_out, n_in) bilinear interpolation matrix, align_corners=True."""
    if n_in == 1:
        return np.ones((n_out, 1), np.float32)
    if n_out == 1:                      # degenerate output size: src index 0
        m = np.zeros((1, n_in), np.float32)
        m[0, 0] = 1.0
        return m
    src = np.arange(n_out, dtype=np.float64) * (n_in - 1) / (n_out - 1)
    i0 = np.clip(np.floor(src).astype(np.int64), 0, n_in - 2)
    w1 = (src - i0).astype(np.float32)
    w0 = 1.0 - w1
    m = np.zeros((n_out, n_in), np.float32)
    r = np.arange(n_out)
    m[r, i0] += w0
    m[r, i0 + 1] += w1
    return m


@functools.lru_cache(maxsize=None)
def _ppm_tables(h, w, tp, hw_pad):
    """Pooling mask Q and upsample matrix M, pre-tiled as (nt, 50, tp) with the
    pixel axis lane-dense; padded pixel columns are exactly zero.  Also returns
    the per-bin inverse areas (applied in f32 glue, not baked into bf16 Q)."""
    hw = h * w
    nt = hw_pad // tp
    q = np.zeros((N_POS, hw_pad), np.float32)
    m = np.zeros((N_POS, hw_pad), np.float32)
    inv_area = np.zeros((N_POS,), np.float32)
    off = 0
    for k in POOL_SIZES:
        mh, ah = _pool_mask_np(h, k)                         # (k, h), (k,)
        mw, aw = _pool_mask_np(w, k)                         # (k, w), (k,)
        q[off:off + k * k, :hw] = (mh[:, None, :, None]
                                   * mw[None, :, None, :]).reshape(k * k, hw)
        inv_area[off:off + k * k] = 1.0 / np.outer(ah, aw).reshape(-1)
        ih = _interp_matrix_np(k, h)                         # (h, k)
        iw = _interp_matrix_np(k, w)                         # (w, k)
        m[off:off + k * k, :hw] = (ih[:, None, :, None]
                                   * iw[None, :, None, :]).reshape(hw, k * k).T
        off += k * k
    q = np.ascontiguousarray(q.reshape(N_POS, nt, tp).transpose(1, 0, 2))
    m = np.ascontiguousarray(m.reshape(N_POS, nt, tp).transpose(1, 0, 2))
    return q, m, inv_area


def _bn_fold(gamma, beta, mean, var):
    scale = gamma / jnp.sqrt(var + EPS)
    shift = beta - mean * scale
    return scale, shift


# ----------------------- generation-aware VMEM budgeting ---------------------
def _vmem_limit_bytes():
    try:
        cap = int(pltpu.get_tpu_info().vmem_capacity_bytes)
    except Exception:                                        # CPU trace / old API
        cap = 64 << 20
    # v7x: 64 MiB physical -> ~40 MiB scoped; v5e/v6e: 128 MiB -> ~72 MiB.
    return min(cap // 2 + (8 << 20), 96 << 20)


def _pick_tile(hw, c_in, c_out, itemsize, budget_bytes):
    """Largest 128-multiple pixel tile whose double-buffered streams plus the
    VMEM-resident Q/M table fit the budget."""
    hw128 = -(-hw // 128) * 128

    def footprint(tp):
        resident = 2 * N_POS * (hw128 + tp) * itemsize               # Q or M
        stream = 2 * tp * (c_in * itemsize + c_out * 4)              # x in + f32 out
        misc = (2 * c_in * N_POS * 4                                 # k1 scratch/out
                + 2 * c_out * (N_POS + c_in) * itemsize              # z, wx
                + (2 << 20))                                         # slack
        return resident + stream + misc

    tp, cand = 128, 256
    while cand <= hw128 and footprint(cand) <= budget_bytes:
        tp = cand
        cand += 128
    tp = min(tp, hw128)
    hw_pad = -(-hw // tp) * tp
    return tp, hw_pad


# ---------------- Kernel 1: all adaptive average pools in one pass ----------
def _pool_kernel(x_ref, q_ref, o_ref, acc_ref):
    # x_ref: (1, c_in, tp)   q_ref: (nt, 50, tp) resident   o_ref: (1, c_in, 50)
    # acc_ref: (c_in, 50) f32 scratch
    t = pl.program_id(1)

    @pl.when(t == 0)
    def _():
        acc_ref[...] = jnp.zeros_like(acc_ref)

    acc_ref[...] += jax.lax.dot_general(
        x_ref[0], q_ref[t],
        dimension_numbers=(((1,), (1,)), ((), ())),          # contract pixels
        preferred_element_type=jnp.float32)

    @pl.when(t == pl.num_programs(1) - 1)
    def _():
        o_ref[0] = acc_ref[...]


# --------- Kernel 2: fused upsample + concat + 1x1 conv + BN + ReLU ---------
def _ppm_out_kernel(x_ref, m_ref, z_ref, wx_ref, o_ref):
    # x_ref: (1, c_in, tp)   m_ref: (nt, 50, tp) resident   z_ref: (1, c_out, 50)
    # wx_ref: (c_out, c_in)  o_ref: (1, c_out, tp)
    t = pl.program_id(1)
    acc = jnp.dot(wx_ref[...], x_ref[0], preferred_element_type=jnp.float32)
    acc = acc + jnp.dot(z_ref[0], m_ref[t], preferred_element_type=jnp.float32)
    o_ref[0] = jnp.maximum(acc, 0.0).astype(o_ref.dtype)


# ------------------------------- module wrapper ------------------------------
def pyramid_pooling(x_nchw, p, *, compute_dtype=jnp.bfloat16):
    n, c_in, h, w = x_nchw.shape
    c_inter = p["w1"].shape[0]
    c_out = p["wo"].shape[0]
    c_cat = c_in + 4 * c_inter
    assert p["wo"].shape[1] == c_cat
    hw = h * w

    cdt = jnp.dtype(compute_dtype)
    itemsize = cdt.itemsize
    vmem_limit = _vmem_limit_bytes()
    tp, hw_pad = _pick_tile(hw, c_in, c_out, itemsize, vmem_limit - (6 << 20))
    nt = hw_pad // tp

    q_np, m_np, inv_area_np = _ppm_tables(h, w, tp, hw_pad)  # host-side, cached
    q_all = jnp.asarray(q_np).astype(cdt)                    # (nt, 50, tp), 0/1 exact
    m_all = jnp.asarray(m_np).astype(cdt)                    # (nt, 50, tp)
    inv_area = jnp.asarray(inv_area_np)

    # NCHW kept; H,W flattened to one lane-dense pixel axis, padded to tile.
    x2 = x_nchw.reshape(n, c_in, hw)
    if hw_pad != hw:
        x2 = jnp.pad(x2, ((0, 0), (0, 0), (0, hw_pad - hw)))
    x2 = x2.astype(cdt)

    # Kernel 1: pooled sums for every pyramid bin, per image: (n, c_in, 50).
    pool_sums = pl.pallas_call(
        _pool_kernel,
        out_shape=jax.ShapeDtypeStruct((n, c_in, N_POS), jnp.float32),
        grid=(n, nt),
        in_specs=[
            pl.BlockSpec((1, c_in, tp), lambda i, t: (i, 0, t)),
            pl.BlockSpec((nt, N_POS, tp), lambda i, t: (0, 0, 0)),  # VMEM-resident
        ],
        out_specs=pl.BlockSpec((1, c_in, N_POS), lambda i, t: (i, 0, 0)),
        scratch_shapes=[pltpu.VMEM((c_in, N_POS), jnp.float32)],
        compiler_params=pltpu.CompilerParams(
            dimension_semantics=("parallel", "arbitrary"),
            vmem_limit_bytes=vmem_limit),
    )(x2, q_all)

    # Tiny XLA glue (<=50 positions per image): turn sums into averages,
    # per-branch 1x1 conv + BN + ReLU, then fold the final conv's per-branch
    # weight slice (and its BN scale) into a (n, c_out, 50) table z.
    pooled = pool_sums * inv_area[None, None, :]             # exact f32 averages
    s_o, t_o = _bn_fold(p["bno_g"], p["bno_b"], p["bno_m"], p["bno_v"])
    wo_s = p["wo"][:, :, 0, 0] * s_o[:, None]                # (c_out, c_cat)
    wx_s = wo_s[:, :c_in]                                    # (c_out, c_in)

    z_parts, off, col = [], 0, c_in
    for idx, k in zip((1, 2, 3, 4), POOL_SIZES):
        kk = k * k
        s_k, t_k = _bn_fold(p[f"bn{idx}_g"], p[f"bn{idx}_b"],
                            p[f"bn{idx}_m"], p[f"bn{idx}_v"])
        w_k = p[f"w{idx}"][:, :, 0, 0] * s_k[:, None]        # (c_inter, c_in)
        y_k = jax.nn.relu(jnp.einsum('oc,nck->nok', w_k, pooled[:, :, off:off + kk])
                          + t_k[None, :, None])              # (n, c_inter, kk)
        z_parts.append(jnp.einsum('oc,nck->nok', wo_s[:, col:col + c_inter], y_k))
        off += kk
        col += c_inter
    z_all = jnp.concatenate(z_parts, axis=2)                 # (n, c_out, 50)
    # Row 0 of M (1x1-pool branch upsample) is exactly all ones: fold the final
    # BN shift into z instead of carrying a lane-width-1 bias operand.
    z_all = z_all.at[:, :, 0].add(t_o)

    # Kernel 2: fused upsample + concat + final 1x1 conv + BN + ReLU.
    out2 = pl.pallas_call(
        _ppm_out_kernel,
        out_shape=jax.ShapeDtypeStruct((n, c_out, hw_pad), jnp.float32),
        grid=(n, nt),
        in_specs=[
            pl.BlockSpec((1, c_in, tp), lambda i, t: (i, 0, t)),
            pl.BlockSpec((nt, N_POS, tp), lambda i, t: (0, 0, 0)),  # VMEM-resident
            pl.BlockSpec((1, c_out, N_POS), lambda i, t: (i, 0, 0)),
            pl.BlockSpec((c_out, c_in), lambda i, t: (0, 0)),
        ],
        out_specs=pl.BlockSpec((1, c_out, tp), lambda i, t: (i, 0, t)),
        compiler_params=pltpu.CompilerParams(
            dimension_semantics=("parallel", "parallel"),
            vmem_limit_bytes=vmem_limit),
    )(x2, m_all, z_all.astype(cdt), wx_s.astype(cdt))

    if hw_pad != hw:
        out2 = out2[:, :, :hw]
    return out2.reshape(n, c_out, h, w)


# ----------------------------- pure-JAX reference ----------------------------
def _bn_nchw(x, g, b, m, v):
    inv = g / jnp.sqrt(v + EPS)
    return (x - m[None, :, None, None]) * inv[None, :, None, None] \
        + b[None, :, None, None]


def reference(x, p):
    n, c_in, h, w = x.shape
    feats = [x]
    for idx, k in zip((1, 2, 3, 4), POOL_SIZES):
        mh, ah = _pool_mask_np(h, k)
        mw, aw = _pool_mask_np(w, k)
        ph = jnp.asarray(mh / ah[:, None])
        pw = jnp.asarray(mw / aw[:, None])
        pooled = jnp.einsum('ih,nchw,jw->ncij', ph, x, pw)
        y = jnp.einsum('oc,ncij->noij', p[f"w{idx}"][:, :, 0, 0], pooled)
        y = jax.nn.relu(_bn_nchw(y, p[f"bn{idx}_g"], p[f"bn{idx}_b"],
                                 p[f"bn{idx}_m"], p[f"bn{idx}_v"]))
        ih = jnp.asarray(_interp_matrix_np(k, h))
        iw = jnp.asarray(_interp_matrix_np(k, w))
        feats.append(jnp.einsum('hi,noij,wj->nohw', ih, y, iw))
    cat = jnp.concatenate(feats, axis=1)
    out = jnp.einsum('oc,nchw->nohw', p["wo"][:, :, 0, 0], cat)
    return jax.nn.relu(_bn_nchw(out, p["bno_g"], p["bno_b"],
                                p["bno_m"], p["bno_v"]))


if __name__ == "__main__":
    N, C_IN, C_OUT = 2, 32, 32
    H = W = 16
    C_INTER = C_IN // 4
    C_CAT = C_IN + 4 * C_INTER

    keys = iter(jax.random.split(jax.random.PRNGKey(0), 64))
    u = lambda s: jax.random.uniform(next(keys), s, jnp.float32, 0.5, 1.5)
    nrm = lambda s, sc: jax.random.normal(next(keys), s, jnp.float32) * sc

    params = {}
    for idx in (1, 2, 3, 4):
        params[f"w{idx}"] = nrm((C_INTER, C_IN, 1, 1), 0.2)
        params[f"bn{idx}_g"] = u((C_INTER,))
        params[f"bn{idx}_b"] = nrm((C_INTER,), 0.1)
        params[f"bn{idx}_m"] = nrm((C_INTER,), 0.1)
        params[f"bn{idx}_v"] = u((C_INTER,))
    params["wo"] = nrm((C_OUT, C_CAT, 1, 1), 0.1)
    params["bno_g"] = u((C_OUT,))
    params["bno_b"] = nrm((C_OUT,), 0.1)
    params["bno_m"] = nrm((C_OUT,), 0.1)
    params["bno_v"] = u((C_OUT,))

    x = jax.random.normal(next(keys), (N, C_IN, H, W), jnp.float32)

    ref = jax.block_until_ready(reference(x, params))

    # Exactness check: f32 compute path must match the reference tightly.
    out_f32 = jax.block_until_ready(
        pyramid_pooling(x, params, compute_dtype=jnp.float32))
    assert out_f32.shape == ref.shape == (N, C_OUT, H, W)
    err32 = float(jnp.max(jnp.abs(out_f32 - ref)))
    assert jnp.allclose(out_f32, ref, atol=2e-3, rtol=2e-3), err32

    # Default bf16 MXU-feed path (f32 accumulation): bf16-level tolerance.
    out_bf16 = jax.block_until_ready(pyramid_pooling(x, params))
    assert out_bf16.shape == (N, C_OUT, H, W)
    err16 = float(jnp.max(jnp.abs(out_bf16 - ref)))
    assert jnp.allclose(out_bf16, ref, atol=5e-2, rtol=5e-2), err16

    print("KERNEL_OK")
</pallas_src>

<mosaic_0001>
module attributes {stable_mosaic.version = 11 : i64} {
  func.func @_pool_kernel(%arg0: i32, %arg1: i32, %arg2: memref<1x32x256xf32, #tpu.memory_space<vmem>>, %arg3: memref<1x50x256xf32, #tpu.memory_space<vmem>>, %arg4: memref<1x32x50xf32, #tpu.memory_space<vmem>>, %arg5: memref<32x50xf32, #tpu.memory_space<vmem>>) attributes {dimension_semantics = [#tpu.dimension_semantics<parallel>, #tpu.dimension_semantics<arbitrary>], iteration_bounds = array<i64: 2, 1>, scalar_prefetch = 0 : i64, scratch_operands = 1 : i64, tpu.core_type = #tpu.core_type<tc>, window_params = [{transform_indices = @transform_0, window_bounds = array<i64: 1, 32, 256>}, {pipeline_mode = #tpu.pipeline_mode<synchronous>, transform_indices = @transform_1, window_bounds = array<i64: 1, 50, 256>}, {transform_indices = @transform_2, window_bounds = array<i64: 1, 32, 50>}]} {
    %c0_i32 = arith.constant 0 : i32
    %0 = arith.cmpi eq, %arg1, %c0_i32 : i32
    %1 = arith.extui %0 : i1 to i32
    %c0_i32_0 = arith.constant 0 : i32
    %2 = arith.cmpi ne, %1, %c0_i32_0 : i32
    scf.if %2 {
      %cst_11 = arith.constant 0.000000e+00 : f32
      %15 = vector.broadcast %cst_11 : f32 to vector<32x50xf32>
      %c0_12 = arith.constant 0 : index
      %c0_13 = arith.constant 0 : index
      %16 = vector.load %arg5[%c0_12, %c0_13] : memref<32x50xf32, #tpu.memory_space<vmem>>, vector<32x50xf32>
      tpu.vector_store %arg5[%c0_12, %c0_13], %15 {strides = array<i32>} : memref<32x50xf32, #tpu.memory_space<vmem>>, vector<32x50xf32>,
    } else {
    }
    %c0 = arith.constant 0 : index
    %c0_1 = arith.constant 0 : index
    %3 = vector.load %arg5[%c0, %c0_1] : memref<32x50xf32, #tpu.memory_space<vmem>>, vector<32x50xf32>
    %c0_2 = arith.constant 0 : index
    %c0_3 = arith.constant 0 : index
    %c0_4 = arith.constant 0 : index
    %4 = vector.load %arg2[%c0_2, %c0_3, %c0_4] : memref<1x32x256xf32, #tpu.memory_space<vmem>>, vector<1x32x256xf32>
    %5 = vector.shape_cast %4 : vector<1x32x256xf32> to vector<32x256xf32>
    %6 = arith.index_cast %arg1 : i32 to index
    %c0_5 = arith.constant 0 : index
    %c0_6 = arith.constant 0 : index
    %7 = vector.load %arg3[%6, %c0_5, %c0_6] : memref<1x50x256xf32, #tpu.memory_space<vmem>>, vector<1x50x256xf32>
    %8 = vector.shape_cast %7 : vector<1x50x256xf32> to vector<50x256xf32>
    %cst = arith.constant dense<0.000000e+00> : vector<32x50xf32>
    %9 = tpu.matmul %5, %8, %cst {dimension_numbers = #tpu.dot_dimension_numbers<[1], [1], [0], [0], [0, 0, 1, 0], [], []>} : vector<32x256xf32>, vector<50x256xf32>, vector<32x50xf32> -> vector<32x50xf32>
    %10 = arith.addf %3, %9 : vector<32x50xf32>
    %c0_7 = arith.constant 0 : index
    %c0_8 = arith.constant 0 : index
    %11 = vector.load %arg5[%c0_7, %c0_8] : memref<32x50xf32, #tpu.memory_space<vmem>>, vector<32x50xf32>
    tpu.vector_store %arg5[%c0_7, %c0_8], %10 {strides = array<i32>} : memref<32x50xf32, #tpu.memory_space<vmem>>, vector<32x50xf32>,
    %c0_i32_9 = arith.constant 0 : i32
    %12 = arith.cmpi eq, %arg1, %c0_i32_9 : i32
    %13 = arith.extui %12 : i1 to i32
    %c0_i32_10 = arith.constant 0 : i32
    %14 = arith.cmpi ne, %13, %c0_i32_10 : i32
    scf.if %14 {
      %c0_11 = arith.constant 0 : index
      %c0_12 = arith.constant 0 : index
      %15 = vector.load %arg5[%c0_11, %c0_12] : memref<32x50xf32, #tpu.memory_space<vmem>>, vector<32x50xf32>
      %c0_13 = arith.constant 0 : index
      %c0_14 = arith.constant 0 : index
      %c0_15 = arith.constant 0 : index
      %16 = vector.load %arg4[%c0_13, %c0_14, %c0_15] : memref<1x32x50xf32, #tpu.memory_space<vmem>>, vector<1x32x50xf32>
      %17 = vector.shape_cast %16 : vector<1x32x50xf32> to vector<32x50xf32>
      %18 = vector.shape_cast %15 : vector<32x50xf32> to vector<1x32x50xf32>
      tpu.vector_store %arg4[%c0_13, %c0_14, %c0_15], %18 {strides = array<i32>} : memref<1x32x50xf32, #tpu.memory_space<vmem>>, vector<1x32x50xf32>,
    } else {
    }
    return
  }
  func.func @transform_0(%arg0: i32, %arg1: i32) -> (i32, i32, i32) {
    %c0_i32 = arith.constant 0 : i32
    %c0_i32_0 = arith.constant 0 : i32
    return %arg0, %c0_i32, %arg1 : i32, i32, i32
  }
  func.func @transform_1(%arg0: i32, %arg1: i32) -> (i32, i32, i32) {
    %c0_i32 = arith.constant 0 : i32
    %c0_i32_0 = arith.constant 0 : i32
    %c0_i32_1 = arith.constant 0 : i32
    %c0_i32_2 = arith.constant 0 : i32
    return %c0_i32, %c0_i32_0, %c0_i32_1 : i32, i32, i32
  }
  func.func @transform_2(%arg0: i32, %arg1: i32) -> (i32, i32, i32) {
    %c0_i32 = arith.constant 0 : i32
    %c0_i32_0 = arith.constant 0 : i32
    %c0_i32_1 = arith.constant 0 : i32
    return %arg0, %c0_i32, %c0_i32_0 : i32, i32, i32
  }
}

</mosaic_0001>

<llo_original>
// kernel: tpu_custom_call.1
$region0: #{tpu_custom_call.1}
  #allocation0 [shape = 'u32[]', space=smem, size = 0x4, offset = 0x4, fixed_abs, tag = 'smem constant byte address 0x4 - core index']
  #allocation1 [shape = 'u32[144,128]{1,0:T(1,128)}', space=vmem, size = 0x12000, scoped, tag = 'internal scratch']
  #allocation2 [shape = 'f32[32,50]{1,0:T(8,128)}', space=vmem, size = 0x4000, scoped, tag = 'scratch operand']
  %s0 = inlined_call_operand.vmem [shape: f32[2,32,256], index: 0, kind: input, shape index: {}]
  %s1 = inlined_call_operand.vmem [shape: f32[1,50,256], index: 1, kind: input, shape index: {}]
  %s2 = inlined_call_operand.hbm [shape: f32[2,32,50], index: 2, kind: output, shape index: {}]
  %s3 = sld [smem:[#allocation0]]
  $region49: #{tpu_custom_call.1} parent=0
    _
  %s5 = ssub.s32 1, %s3
  %s6 = scalar_select 0, %s5, %s3
  $region1: #{tpu_custom_call.1} parent=0
    #allocation3 [shape = 'u8[32768]{0}', space=vmem, size = 0x8000, scoped, tag = 'output window, operand 0']
    #allocation4 [shape = 's32[2]{0}', space=sflag, size = 0x8, scoped, tag = 'scoped memory for tpu_custom_call.1']
    %7 = vsyncpa [#allocation4], 0
    %s8 = scalar_lea.sflag [#allocation4], 1
    %9 = vsyncpa %s8, 0
    loop: start=0, step=1, limit=4
    $region2: #{tpu_custom_call.1} parent=1 // loop_pre_header
      _
    $region3: #{tpu_custom_call.1} parent=1 // loop_header
      %s11 = sphi 0, %s15
      %p12 = scmp.ge.s32.totalorder %s11, 4
      %s18 = sphi 0, %s30
      %s19 = sphi 0, %s26
      %s20 = sphi 0, %s18
      %s21 = sphi 0, %s19
      %s22 = sphi 0, %s20
      %s23 = sphi 0, %s21
      %s35 = sphi 0, %s37
      %s38 = sphi 0, %s35
      %s39 = sphi 0, %s38
      %s55 = sphi 0, %s39
      %s59 = sphi 0, %s59
      %s61 = sphi 0, %s59
      %s62 = sphi 0, %s61
      %s76 = sphi 0, %s62
      %s82 = sphi 0, %s84
      %s85 = sphi 0, %s82
      %s86 = sphi 0, %s85
      %s102 = sphi 0, %s86
    $region4: #{tpu_custom_call.1} parent=1 // loop_header_branch
      %14 = sbr.rel (%p12) target = $region8
    $region5: #{tpu_custom_call.1} parent=1 // loop_body
      %s16 = ssub.s32 %s11, 1
      %s17 = ssub.s32 %s11, 2
      %s24 = sadd.s32 1, %s19
      %p25 = scmp.ge.s32.totalorder %s24, 1
      %s26 = scalar_select %p25, 0, %s24
      %s27 = sadd.s32 1, %s18
      %s28 = scalar_select %p25, %s27, %s18
      %p29 = scmp.ge.s32.totalorder %s28, 2
      %s30 = scalar_select %p29, 0, %s28
      %s31 = ssub.s32 %s18, %s30
      %s32 = ssub.s32 %s19, %s26
      %s33 = sor.u32 %s31, %s32
      %p34 = scmp.eq.s32.totalorder %s33, 0
      %s36 = sadd.s32 %s35, 1
      %s37 = scalar_select %p34, %s35, %s36
      %p40 = pneg %p34
      %p41 = scmp.eq.s32.totalorder %s11, 1
      %p42 = por %p40, %p41
      %p43 = scmp.ne.s32.totalorder %s35, %s38
      %p44 = scmp.eq.s32.totalorder %s11, 0
      %p45 = por %p43, %p44
      %p46 = scmp.ne.s32.totalorder %s35, %s38
      %p47 = scmp.eq.s32.totalorder %s16, 1
      %p48 = por %p46, %p47
      %p49 = scmp.ne.s32.totalorder %s38, %s39
      %p50 = scmp.eq.s32.totalorder %s16, 0
      %p51 = por %p49, %p50
      %p52 = scmp.ne.s32.totalorder %s38, %s39
      %p53 = scmp.eq.s32.totalorder %s17, 1
      %p54 = por %p52, %p53
      %p56 = scmp.ne.s32.totalorder %s39, %s55
      %p57 = scmp.eq.s32.totalorder %s17, 0
      %p58 = por %p56, %p57
      %s60 = sadd.s32 %s59, 1
      %p63 = scmp.eq.s32.totalorder %s11, 1
      %p64 = scmp.ne.s32.totalorder %s59, %s61
      %p65 = scmp.eq.s32.totalorder %s11, 0
      %p66 = por %p64, %p65
      %p67 = scmp.ne.s32.totalorder %s59, %s61
      %p68 = scmp.eq.s32.totalorder %s16, 1
      %p69 = por %p67, %p68
      %p70 = scmp.ne.s32.totalorder %s61, %s62
      %p71 = scmp.eq.s32.totalorder %s16, 0
      %p72 = por %p70, %p71
      %p73 = scmp.ne.s32.totalorder %s61, %s62
      %p74 = scmp.eq.s32.totalorder %s17, 1
      %p75 = por %p73, %p74
      %p77 = scmp.ne.s32.totalorder %s62, %s76
      %p78 = scmp.eq.s32.totalorder %s17, 0
      %p79 = por %p77, %p78
      %s80 = ssub.s32 %s18, %s30
      %p81 = scmp.eq.s32.totalorder %s80, 0
      %s83 = sadd.s32 %s82, 1
      %s84 = scalar_select %p81, %s82, %s83
      %p87 = pneg %p81
      %p88 = scmp.eq.s32.totalorder %s11, 1
      %p89 = por %p87, %p88
      %p90 = scmp.ne.s32.totalorder %s82, %s85
      %p91 = scmp.eq.s32.totalorder %s11, 0
      %p92 = por %p90, %p91
      %p93 = scmp.ne.s32.totalorder %s82, %s85
      %p94 = scmp.eq.s32.totalorder %s16, 1
      %p95 = por %p93, %p94
      %p96 = scmp.ne.s32.totalorder %s85, %s86
      %p97 = scmp.eq.s32.totalorder %s16, 0
      %p98 = por %p96, %p97
      %p99 = scmp.ne.s32.totalorder %s85, %s86
      %p100 = scmp.eq.s32.totalorder %s17, 1
      %p101 = por %p99, %p100
      %p103 = scmp.ne.s32.totalorder %s86, %s102
      %p104 = scmp.eq.s32.totalorder %s17, 0
      %p105 = por %p103, %p104
      %p106 = scmp.le.s32.totalorder 1, %s11
      %p107 = scmp.lt.s32.totalorder %s11, 3
      %p108 = pnand %p106, %p107
      %p109 = pneg %p108
      // Predicated region
      $region9: #{tpu_custom_call.1} parent=5 // pred_check
        _
      $region10: #{tpu_custom_call.1} parent=5 // pred_check_branch
        %111 = sbr.rel (%p108) target = $region12
      $region11: #{tpu_custom_call.1} parent=5 // pred_region
        %s112 = ssub.s32 %s11, 1
        // Predicated region
        $region13: #{tpu_custom_call.1} parent=11 // pred_check
          %p113 = pneg %p72
        $region14: #{tpu_custom_call.1} parent=11 // pred_check_branch
          %115 = sbr.rel (%p113) target = $region16
        $region15: #{tpu_custom_call.1} parent=11 // pred_region
          _
        $region16: #{tpu_custom_call.1} parent=11 // pred_fallthru
          _
      $region12: #{tpu_custom_call.1} parent=5 // pred_fallthru
        _
      %p116 = scmp.lt.s32.totalorder %s11, 2
      // Predicated region
      $region17: #{tpu_custom_call.1} parent=5 // pred_check
        %p117 = pneg %p116
      $region18: #{tpu_custom_call.1} parent=5 // pred_check_branch
        %119 = sbr.rel (%p117) target = $region20
      $region19: #{tpu_custom_call.1} parent=5 // pred_region
        // Predicated region
        $region21: #{tpu_custom_call.1} parent=19 // pred_check
          %p120 = pneg %p45
        $region22: #{tpu_custom_call.1} parent=19 // pred_check_branch
          %122 = sbr.rel (%p120) target = $region24
        $region23: #{tpu_custom_call.1} parent=19 // pred_region
          %s123 = smul.u32 2, %s19
          %p124 = scmp.lt.s32.totalorder %s18, 1
          %s125 = scalar_select %p124, %s18, 1
          %p126 = scmp.lt.s32.totalorder %s123, 1
          %s127 = scalar_select %p126, %s123, 1
          %s128 = smul.addr %s125, 8
          %s129 = sadd.s32 %s127, %s128
          %s130 = smul.addr %s129, 8
          %s131 = scalar_lea.vmem %s0, %s130
          %s132 = smul.u32 2, %s19
        $region24: #{tpu_custom_call.1} parent=19 // pred_fallthru
          _
      $region20: #{tpu_custom_call.1} parent=5 // pred_fallthru
        _
      %p133 = scmp.le.s32.totalorder 1, %s11
      %p134 = scmp.lt.s32.totalorder %s11, 3
      %p135 = pnand %p133, %p134
      %p136 = pneg %p135
      // Predicated region
      $region25: #{tpu_custom_call.1} parent=5 // pred_check
        _
      $region26: #{tpu_custom_call.1} parent=5 // pred_check_branch
        %138 = sbr.rel (%p135) target = $region28
      $region27: #{tpu_custom_call.1} parent=5 // pred_region
        %s139 = ssub.s32 %s11, 1
        %s140 = smul.u32 2, %s21
        %p141 = scmp.lt.s32.totalorder %s20, 1
        %s142 = scalar_select %p141, %s20, 1
        %p143 = scmp.lt.s32.totalorder %s140, 1
        %s144 = scalar_select %p143, %s140, 1
        %s145 = smul.addr %s142, 8
        %s146 = sadd.s32 %s144, %s145
        %s147 = smul.addr %s146, 8
        %s148 = scalar_lea.vmem %s0, %s147
        %p149 = pneg %p51
        %p150 = pneg %p48
        %p151 = pneg %p72
        %p152 = pneg %p69
        %p153 = pneg %p98
        %p154 = pneg %p95
        %s155 = sand.u32 %s85, 1
        %s156 = scalar_lea.sflag [#allocation4], %s155
        %s157 = sand.u32 %s85, 1
        %s158 = smul.addr %s157, 32
        %s159 = scalar_lea.vmem [#allocation3], %s158
        %s160 = smul.u32 2, %s21
        %p161 = scmp.lt.s32.totalorder %s20, 1
        %s162 = scalar_select %p161, %s20, 1
        %p163 = scmp.lt.s32.totalorder %s160, 1
        %s164 = scalar_select %p163, %s160, 1
        %s165 = smul.addr %s162, 8
        %s166 = sadd.s32 %s164, %s165
        %s167 = smul.addr %s166, 8
        %s168 = scalar_lea.vmem %s0, %s167
        %s169 = smul.u32 2, %s21
        %p170 = scmp.eq.s32.totalorder %s21, 0
        // Predicated region
        $region29: #{tpu_custom_call.1} parent=27 // pred_check
          %p171 = pneg %p170
        $region30: #{tpu_custom_call.1} parent=27 // pred_check_branch
          %173 = sbr.rel (%p171) target = $region32
        $region31: #{tpu_custom_call.1} parent=27 // pred_region
          %vm174 = vcmask 408576
          %175 = vst.msk [vmem:[#allocation2] sm:$0xff] %vm174, 0.0
          %176 = vst.msk [vmem:[#allocation2 + $0x8] sm:$0xff] %vm174, 0.0
          %177 = vst.msk [vmem:[#allocation2 + $0x10] sm:$0xff] %vm174, 0.0
          %178 = vst.msk [vmem:[#allocation2 + $0x18] sm:$0xff] %vm174, 0.0
        $region32: #{tpu_custom_call.1} parent=27 // pred_fallthru
          _
        %v179 = vld [vmem:[#allocation2] sm:$0xff]
        %v180 = vld [vmem:[#allocation2 + $0x8] sm:$0xff]
        %v181 = vld [vmem:[#allocation2 + $0x10] sm:$0xff]
        %v182 = vld [vmem:[#allocation2 + $0x18] sm:$0xff]
        %v183 = vld [vmem:[%s168] sm:$0xff]
        %v184 = vld [vmem:[%s168 + $0x8] sm:$0xff]
        %v185 = vld [vmem:[%s168 + $0x10] sm:$0xff]
        %v186 = vld [vmem:[%s168 + $0x18] sm:$0xff]
        %v187 = vld [vmem:[%s168 + $0x20] sm:$0xff]
        %v188 = vld [vmem:[%s168 + $0x28] sm:$0xff]
        %v189 = vld [vmem:[%s168 + $0x30] sm:$0xff]
        %v190 = vld [vmem:[%s168 + $0x38] sm:$0xff]
        %s191 = smul.u32 %s21, 14
        %s192 = smul.addr %s191, 8
        %s193 = scalar_lea.vmem %s1, %s192
        %v194 = vld [vmem:[%s193] sm:$0xff]
        %v195 = vld [vmem:[%s193 + $0x8] sm:$0xff]
        %v196 = vld [vmem:[%s193 + $0x10] sm:$0xff]
        %v197 = vld [vmem:[%s193 + $0x18] sm:$0xff]
        %v198 = vld [vmem:[%s193 + $0x20] sm:$0xff]
        %v199 = vld [vmem:[%s193 + $0x28] sm:$0xff]
        %v200 = vld [vmem:[%s193 + $0x30] sm:$0xff]
        %v201 = vld [vmem:[%s193 + $0x38] sm:$0xff]
        %v202 = vld [vmem:[%s193 + $0x40] sm:$0xff]
        %v203 = vld [vmem:[%s193 + $0x48] sm:$0xff]
        %v204 = vld [vmem:[%s193 + $0x50] sm:$0xff]
        %v205 = vld [vmem:[%s193 + $0x58] sm:$0xff]
        %v206 = vld [vmem:[%s193 + $0x60] sm:$0x3]
        %v207 = vld [vmem:[%s193 + $0x68] sm:$0x3]
        %208 = vmatprep.subr.mxu0 0.0
        %209 = vmatpush1.xpose.msra.mxu0 0.0
        %210 = vmatprep.subr.mxu0 0.0
        %211 = vmatpush1.xpose.msra.mxu0 0.0
        %212 = vmatprep.subr.mxu0 0.0
        %213 = vmatpush1.xpose.msra.mxu0 0.0
        %214 = vmatprep.subr.mxu0 0.0
        %215 = vmatpush1.xpose.msra.mxu0 0.0
        %216 = vmatprep.subr.mxu0 0.0
        %217 = vmatpush1.xpose.msra.mxu0 0.0
        %218 = vmatprep.subr.mxu0 0.0
        %219 = vmatpush1.xpose.msra.mxu0 0.0
        %220 = vmatprep.subr.mxu0 0.0
        %221 = vmatpush1.xpose.msra.mxu0 0.0
        %222 = vmatprep.subr.mxu0 0.0
        %223 = vmatpush1.xpose.msra.mxu0 0.0
        %224 = vmatprep.subr.mxu0 0.0
        %225 = vmatpush1.xpose.msra.mxu0 0.0
        %226 = vmatprep.subr.mxu0 %v207
        %227 = vmatpush1.xpose.msra.mxu0 %v206
        %228 = vmatprep.subr.mxu0 %v205
        %229 = vmatpush1.xpose.msra.mxu0 %v204
        %230 = vmatprep.subr.mxu0 %v203
        %231 = vmatpush1.xpose.msra.mxu0 %v202
        %232 = vmatprep.subr.mxu0 %v201
        %233 = vmatpush1.xpose.msra.mxu0 %v200
        %234 = vmatprep.subr.mxu0 %v199
        %235 = vmatpush1.xpose.msra.mxu0 %v198
        %236 = vmatprep.subr.mxu0 %v197
        %237 = vmatpush1.xpose.msra.mxu0 %v196
        %238 = vmatprep.subr.mxu0 %v195
        %239 = vmatpush1.xpose.msra.mxu0 %v194
        %240 = vmatprep.subr.mxu0 0.0
        %241 = vmatpush2.xpose.msra.mxu0 0.0
        %242 = vmatprep.subr.mxu0 0.0
        %243 = vmatpush2.xpose.msra.mxu0 0.0
        %244 = vmatprep.subr.mxu0 0.0
        %245 = vmatpush2.xpose.msra.mxu0 0.0
        %246 = vmatprep.subr.mxu0 0.0
        %247 = vmatpush2.xpose.msra.mxu0 0.0
        %248 = vmatprep.subr.mxu0 0.0
        %249 = vmatpush2.xpose.msra.mxu0 0.0
        %250 = vmatprep.subr.mxu0 0.0
        %251 = vmatpush2.xpose.msra.mxu0 0.0
        %252 = vmatprep.subr.mxu0 0.0
        %253 = vmatpush2.xpose.msra.mxu0 0.0
        %254 = vmatprep.subr.mxu0 0.0
        %255 = vmatpush2.xpose.msra.mxu0 0.0
        %256 = vmatprep.subr.mxu0 0.0
        %257 = vmatpush2.xpose.msra.mxu0 0.0
        %258 = vmatprep.subr.mxu0 0.0
        %259 = vmatpush2.xpose.msra.mxu0 0.0
        %260 = vmatprep.subr.mxu0 0.0
        %261 = vmatpush2.xpose.msra.mxu0 0.0
        %262 = vmatprep.subr.mxu0 0.0
        %263 = vmatpush2.xpose.msra.mxu0 0.0
        %264 = vmatprep.subr.mxu0 0.0
        %265 = vmatpush2.xpose.msra.mxu0 0.0
        %266 = vmatprep.subr.mxu0 0.0
        %267 = vmatpush2.xpose.msra.mxu0 0.0
        %268 = vmatprep.subr.mxu0 0.0
        %269 = vmatpush2.xpose.msra.mxu0 0.0
        %270 = vmatprep.subr.mxu0 0.0
        %271 = vmatpush2.xpose.msra.mxu0 0.0
        %272 = vmatprep.mubr.f32.mxu0 %v184
        %273 = vmatmul.mubr.f32.gmra.mxu0 %v183
        %v274 = vpop.f32.mrf.mxu0
        %v275 = vadd.f32 0.0, %v274
        %v276 = vpop.f32.mrf.mxu0
        %277 = vmatprep.mubr.f32.mxu0 %v186
        %278 = vmatmul.mubr.f32.gmra.mxu0 %v185
        %v279 = vpop.f32.mrf.mxu0
        %v280 = vadd.f32 0.0, %v279
        %v281 = vpop.f32.mrf.mxu0
        %282 = vmatprep.mubr.f32.mxu0 %v188
        %283 = vmatmul.mubr.f32.gmra.mxu0 %v187
        %v284 = vpop.f32.mrf.mxu0
        %v285 = vadd.f32 0.0, %v284
        %v286 = vpop.f32.mrf.mxu0
        %287 = vmatprep.mubr.f32.mxu0 %v190
        %288 = vmatmul.mubr.f32.gmra.mxu0 %v189
        %v289 = vpop.f32.mrf.mxu0
        %v290 = vadd.f32 0.0, %v289
        %v291 = vpop.f32.mrf.mxu0
        %292 = vdwg.mxu0
        %v293 = vadd.f32 %v179, %v275
        %v294 = vadd.f32 %v180, %v280
        %v295 = vadd.f32 %v181, %v285
        %v296 = vadd.f32 %v182, %v290
        %vm297 = vcmask 408576
        %298 = vst.msk [vmem:[#allocation2] sm:$0xff] %vm297, %v293
        %299 = vst.msk [vmem:[#allocation2 + $0x8] sm:$0xff] %vm297, %v294
        %300 = vst.msk [vmem:[#allocation2 + $0x10] sm:$0xff] %vm297, %v295
        %301 = vst.msk [vmem:[#allocation2 + $0x18] sm:$0xff] %vm297, %v296
        // Predicated region
        $region33: #{tpu_custom_call.1} parent=27 // pred_check
          %p302 = pneg %p170
        $region34: #{tpu_custom_call.1} parent=27 // pred_check_branch
          %304 = sbr.rel (%p302) target = $region36
        $region35: #{tpu_custom_call.1} parent=27 // pred_region
          %v305 = vld [vmem:[#allocation2] sm:$0xff]
          %v306 = vld [vmem:[#allocation2 + $0x8] sm:$0xff]
          %v307 = vld [vmem:[#allocation2 + $0x10] sm:$0xff]
          %v308 = vld [vmem:[#allocation2 + $0x18] sm:$0xff]
          %309 = vst.msk [vmem:[%s159] sm:$0xff] %vm297, %v305
          %310 = vst.msk [vmem:[%s159 + $0x8] sm:$0xff] %vm297, %v306
          %311 = vst.msk [vmem:[%s159 + $0x10] sm:$0xff] %vm297, %v307
          %312 = vst.msk [vmem:[%s159 + $0x18] sm:$0xff] %vm297, %v308
        $region36: #{tpu_custom_call.1} parent=27 // pred_fallthru
          _
        %s313 = sand.u32 %s85, 1
        %s314 = scalar_lea.sflag [#allocation4], %s313
        %s315 = sand.u32 %s85, 1
        %s316 = smul.addr %s315, 32
        %s317 = scalar_lea.vmem [#allocation3], %s316
        // Predicated region
        $region37: #{tpu_custom_call.1} parent=27 // pred_check
          %p318 = pneg %p95
        $region38: #{tpu_custom_call.1} parent=27 // pred_check_branch
          %320 = sbr.rel (%p318) target = $region40
        $region39: #{tpu_custom_call.1} parent=27 // pred_region
          %s322 = ssub.s32 512, 512
          %323 = vsyncadd %s314, %s322
          %s324 = smul.addr %s20, 4
          %s325 = smul.addr %s324, 128
          %s326 = scalar_lea.hbm %s2, %s325
          %s327 = sshll.u32 %s317, 4
          %s328 = int_to_ptr.vmem [resolvable:$true] %s327
          %333 = dma.vmem_to_hbm [thread:$0]  %s328, 512, %s326, %s314, 128, 128, 8
        $region40: #{tpu_custom_call.1} parent=27 // pred_fallthru
          _
      $region28: #{tpu_custom_call.1} parent=5 // pred_fallthru
        _
      %p334 = scmp.le.s32.totalorder 2, %s11
      // Predicated region
      $region41: #{tpu_custom_call.1} parent=5 // pred_check
        %p335 = pneg %p334
      $region42: #{tpu_custom_call.1} parent=5 // pred_check_branch
        %337 = sbr.rel (%p335) target = $region44
      $region43: #{tpu_custom_call.1} parent=5 // pred_region
        %s338 = ssub.s32 %s11, 2
        // Predicated region
        $region45: #{tpu_custom_call.1} parent=43 // pred_check
          %p339 = pneg %p101
        $region46: #{tpu_custom_call.1} parent=43 // pred_check_branch
          %341 = sbr.rel (%p339) target = $region48
        $region47: #{tpu_custom_call.1} parent=43 // pred_region
          %s342 = sand.u32 %s86, 1
          %s343 = scalar_lea.sflag [#allocation4], %s342
          %s344 = sand.u32 %s86, 1
          %s345 = smul.addr %s344, 32
          %s346 = scalar_lea.vmem [#allocation3], %s345
          %347 = dma.done %s343, 512
        $region48: #{tpu_custom_call.1} parent=43 // pred_fallthru
          _
      $region44: #{tpu_custom_call.1} parent=5 // pred_fallthru
        _
    $region6: #{tpu_custom_call.1} parent=1 // loop_footer
      %s15 = sadd.s32 1, %s11
    $region7: #{tpu_custom_call.1} parent=1 // loop_footer_branch
      %10 = sbr.rel target = $region3
    $region8: #{tpu_custom_call.1} parent=1 // loop_exit
      _
    %348 = vsyncpa [#allocation4], 1
    %s349 = scalar_lea.sflag [#allocation4], 1
    %350 = vsyncpa %s349, 1

</llo_original>
